<compile_context>
chip_gen: v7x
topology: tpu7x:2x2x1
jax: 0.10.0
libtpu: 0.0.40
codegen_flags: <defaults>
</compile_context>

<pallas_src>
import functools

import jax
import jax.numpy as jnp
import numpy as np
from jax import lax
from jax.experimental import pallas as pl
from jax.experimental.pallas import tpu as pltpu


# ----------------------------- Pallas kernel -----------------------------

def _ffn_ln_kernel(x_ref, w1_ref, b1_ref, w2_ref, b2_ref, g_ref, bta_ref,
                   o_ref, acc_ref, *, eps, inv_d_model, block_inner, n_k):
    """Fused FFN + residual + LayerNorm.

    Grid: (i over M tiles [parallel], k over d_inner tiles [arbitrary/reduction]).
      x_ref  : (block_m, d_pad)  f32   -- same block for every k (fetched once per M tile)
      w1_ref : (d_pad, block_inner)    -- W1 pre-transposed (bf16), k-th column slab
      b1_ref : (1, d_inner)      f32   -- full bias, resident (constant index_map)
      w2_ref : (block_inner, d_pad)    -- W2 pre-transposed (bf16), k-th row slab
      b2_ref / g_ref / bta_ref : (1, d_pad) f32
      o_ref  : (block_m, d_pad)
      acc_ref: VMEM f32 accumulator (block_m, d_pad)  (unused on the n_k == 1 fast path)
    """
    k = pl.program_id(1)

    x = x_ref[...]                                       # f32, reused as residual below

    # ---- Linear1 slab + bias + ReLU (hidden activation stays in VMEM/vregs) ----
    if n_k == 1:
        b1 = b1_ref[...]
    else:
        start = pl.multiple_of(k * block_inner, 128)
        b1 = b1_ref[:, pl.ds(start, block_inner)]        # slice resident bias, no per-step DMA
    h = jnp.dot(x.astype(w1_ref.dtype), w1_ref[...],     # bf16 MXU, f32 accumulation
                preferred_element_type=jnp.float32)
    h = jnp.maximum(h + b1.astype(jnp.float32), 0.0)
    # Dropout: eval-mode identity.

    # ---- partial Linear2: contract this d_inner slab ----
    partial = jnp.dot(h.astype(w2_ref.dtype), w2_ref[...],
                      preferred_element_type=jnp.float32)

    def _finalize(acc):
        # bias2 + residual + LayerNorm, all on the VMEM-resident tile.
        y = acc + b2_ref[...].astype(jnp.float32) + x.astype(jnp.float32)
        # Statistics use the TRUE d_model (padded lanes of y are exactly zero).
        mean = jnp.sum(y, axis=-1, keepdims=True) * inv_d_model
        ex2 = jnp.sum(y * y, axis=-1, keepdims=True) * inv_d_model
        var = ex2 - mean * mean
        yhat = (y - mean) * lax.rsqrt(var + eps)
        o_ref[...] = (yhat * g_ref[...] + bta_ref[...]).astype(o_ref.dtype)

    if n_k == 1:
        _finalize(partial)                               # resident weights: no acc round-trip

    else:
        @pl.when(k == 0)
        def _():
            acc_ref[...] = partial                       # direct write: no zero-fill pass

        @pl.when(k > 0)
        def _():
            acc_ref[...] += partial

        @pl.when(k == n_k - 1)
        def _():
            _finalize(acc_ref[...])


# ----------------------------- wrapper -----------------------------

def positionwise_ff_forward(inp, params, *, block_m=None, block_inner=None,
                            eps=1e-5, vmem_limit_bytes=None):
    """inp: (qlen, bsz, d_model).  params holds PRE-TRANSPOSED weights:
         w1t: (d_model, d_inner) [bf16 recommended], b1: (1, d_inner) f32,
         w2t: (d_inner, d_model) [bf16 recommended], b2/gamma/beta: (1, d_model) f32.
    """
    qlen, bsz, d_model = inp.shape
    w1t, b1 = params["w1t"], params["b1"]
    w2t, b2 = params["w2t"], params["b2"]
    gamma, beta = params["gamma"], params["beta"]
    d_inner = w1t.shape[1]

    M = qlen * bsz
    x2d = inp.reshape(M, d_model)

    # --- pad d_model to a multiple of 128: lane-dense output tiles (unmasked vst) ---
    d_pad = ((d_model + 127) // 128) * 128
    if d_pad != d_model:
        pad = d_pad - d_model
        x2d = jnp.pad(x2d, ((0, 0), (0, pad)))
        w1t = jnp.pad(w1t, ((0, pad), (0, 0)))
        w2t = jnp.pad(w2t, ((0, 0), (0, pad)))
        b2 = jnp.pad(b2, ((0, 0), (0, pad)))
        gamma = jnp.pad(gamma, ((0, 0), (0, pad)))
        beta = jnp.pad(beta, ((0, 0), (0, pad)))

    # --- d_inner tiling: keep full weights VMEM-resident when they fit ---
    if block_inner is None:
        weight_bytes = 2 * d_pad * d_inner * jnp.dtype(w1t.dtype).itemsize
        if weight_bytes <= 24 * 1024 * 1024:
            block_inner = d_inner                      # constant weight blocks -> resident
        else:
            block_inner = next(c for c in (1024, 512, 256, 128) if d_inner % c == 0)
    assert d_inner % block_inner == 0, "block_inner must divide d_inner"
    n_k = d_inner // block_inner

    # --- M tiling: big tiles to amortize weight streaming, but >= 2 tiles for v7x megacore ---
    if block_m is None:
        if M > 512:
            block_m = next((c for c in (512, 256, 128, 64, 32, 16, 8) if M % c == 0), M)
        else:
            block_m = M
            if M % 2 == 0 and (M // 2) % 8 == 0:
                block_m = M // 2                       # 2 tiles -> both v7x TensorCores busy
    assert M % block_m == 0, "block_m must divide qlen*bsz"
    n_m = M // block_m

    # --- VMEM budget from the actual tile plan (double-buffered inputs/output + f32 acc) ---
    def nbytes(shape, dtype):
        return int(np.prod(shape)) * jnp.dtype(dtype).itemsize

    if vmem_limit_bytes is None:
        need = 2 * (nbytes((block_m, d_pad), x2d.dtype)
                    + nbytes((d_pad, block_inner), w1t.dtype)
                    + nbytes((block_inner, d_pad), w2t.dtype)
                    + nbytes((1, d_inner), b1.dtype)
                    + 3 * nbytes((1, d_pad), gamma.dtype)
                    + nbytes((block_m, d_pad), inp.dtype))
        need += nbytes((block_m, d_pad), jnp.float32)
        vmem_limit_bytes = int(min(max(need + (4 << 20), 32 << 20), 64 << 20))

    grid = (n_m, n_k)

    out2d = pl.pallas_call(
        functools.partial(_ffn_ln_kernel, eps=eps, inv_d_model=1.0 / d_model,
                          block_inner=block_inner, n_k=n_k),
        grid=grid,
        in_specs=[
            pl.BlockSpec((block_m, d_pad), lambda i, k: (i, 0)),       # x (also residual)
            pl.BlockSpec((d_pad, block_inner), lambda i, k: (0, k)),   # W1^T slab (bf16)
            pl.BlockSpec((1, d_inner), lambda i, k: (0, 0)),           # full b1 (resident)
            pl.BlockSpec((block_inner, d_pad), lambda i, k: (k, 0)),   # W2^T slab (bf16)
            pl.BlockSpec((1, d_pad), lambda i, k: (0, 0)),             # b2
            pl.BlockSpec((1, d_pad), lambda i, k: (0, 0)),             # gamma
            pl.BlockSpec((1, d_pad), lambda i, k: (0, 0)),             # beta
        ],
        out_specs=pl.BlockSpec((block_m, d_pad), lambda i, k: (i, 0)),
        out_shape=jax.ShapeDtypeStruct((M, d_pad), inp.dtype),
        scratch_shapes=[pltpu.VMEM((block_m, d_pad), jnp.float32)],
        compiler_params=pltpu.CompilerParams(
            dimension_semantics=("parallel", "arbitrary"),
            vmem_limit_bytes=vmem_limit_bytes,
        ),
    )(x2d, w1t, b1, w2t, b2, gamma, beta)

    if d_pad != d_model:
        out2d = out2d[:, :d_model]
    return out2d.reshape(qlen, bsz, d_model)


# ----------------------------- pure-JAX reference -----------------------------

def reference_forward(inp, w1, b1, w2, b2, gamma, beta, eps=1e-5):
    h = jnp.maximum(inp @ w1.T + b1, 0.0)      # Linear(d_model, d_inner) + ReLU
    core_out = h @ w2.T + b2                   # Linear(d_inner, d_model)
    x = inp + core_out
    mean = x.mean(-1, keepdims=True)
    var = ((x - mean) ** 2).mean(-1, keepdims=True)
    return (x - mean) / jnp.sqrt(var + eps) * gamma + beta


# ----------------------------- main -----------------------------

if __name__ == "__main__":
    # Small but lane-dense shapes: d_model multiple of 128, d_inner multiple of 256.
    d_model, d_inner = 128, 512
    qlen, bsz = 8, 2

    key = jax.random.PRNGKey(0)
    ks = jax.random.split(key, 6)
    w1 = 0.05 * jax.random.normal(ks[0], (d_inner, d_model), jnp.float32)   # PyTorch layout
    b1 = 0.05 * jax.random.normal(ks[1], (d_inner,), jnp.float32)
    w2 = 0.05 * jax.random.normal(ks[2], (d_model, d_inner), jnp.float32)
    b2 = 0.05 * jax.random.normal(ks[3], (d_model,), jnp.float32)
    gamma = jnp.ones((d_model,), jnp.float32)
    beta = jnp.zeros((d_model,), jnp.float32)
    inp = jax.random.normal(ks[4], (qlen, bsz, d_model), jnp.float32)

    # Weights transposed ONCE and stored bf16 (full-rate MXU, half the HBM/VMEM traffic);
    # biases / LayerNorm params stay f32 so all VPU math is f32 (v5e has no bf16 VPU).
    params = {
        "w1t": jnp.asarray(w1.T, dtype=jnp.bfloat16),     # (d_model, d_inner)
        "b1": b1.reshape(1, d_inner),
        "w2t": jnp.asarray(w2.T, dtype=jnp.bfloat16),     # (d_inner, d_model)
        "b2": b2.reshape(1, d_model),
        "gamma": gamma.reshape(1, d_model),
        "beta": beta.reshape(1, d_model),
    }

    out = positionwise_ff_forward(inp, params)
    out = jax.block_until_ready(out)

    ref = reference_forward(inp, w1, b1, w2, b2, gamma, beta)
    np.testing.assert_allclose(np.asarray(out), np.asarray(ref), rtol=2e-2, atol=2e-2)

    print("KERNEL_OK")
</pallas_src>

<mosaic_0001>
module attributes {stable_mosaic.version = 11 : i64} {
  func.func @_ffn_ln_kernel(%arg0: i32, %arg1: i32, %arg2: memref<8x128xf32, #tpu.memory_space<vmem>>, %arg3: memref<128x512xbf16, #tpu.memory_space<vmem>>, %arg4: memref<1x512xf32, #tpu.memory_space<vmem>>, %arg5: memref<512x128xbf16, #tpu.memory_space<vmem>>, %arg6: memref<1x128xf32, #tpu.memory_space<vmem>>, %arg7: memref<1x128xf32, #tpu.memory_space<vmem>>, %arg8: memref<1x128xf32, #tpu.memory_space<vmem>>, %arg9: memref<8x128xf32, #tpu.memory_space<vmem>>, %arg10: memref<8x128xf32, #tpu.memory_space<vmem>>) attributes {dimension_semantics = [#tpu.dimension_semantics<parallel>, #tpu.dimension_semantics<arbitrary>], iteration_bounds = array<i64: 2, 1>, scalar_prefetch = 0 : i64, scratch_operands = 1 : i64, tpu.core_type = #tpu.core_type<tc>, window_params = [{transform_indices = @transform_0, window_bounds = array<i64: 8, 128>}, {transform_indices = @transform_1, window_bounds = array<i64: 128, 512>}, {pipeline_mode = #tpu.pipeline_mode<synchronous>, transform_indices = @transform_2, window_bounds = array<i64: 1, 512>}, {transform_indices = @transform_3, window_bounds = array<i64: 512, 128>}, {pipeline_mode = #tpu.pipeline_mode<synchronous>, transform_indices = @transform_4, window_bounds = array<i64: 1, 128>}, {pipeline_mode = #tpu.pipeline_mode<synchronous>, transform_indices = @transform_5, window_bounds = array<i64: 1, 128>}, {pipeline_mode = #tpu.pipeline_mode<synchronous>, transform_indices = @transform_6, window_bounds = array<i64: 1, 128>}, {transform_indices = @transform_7, window_bounds = array<i64: 8, 128>}]} {
    %c0 = arith.constant 0 : index
    %c0_0 = arith.constant 0 : index
    %0 = vector.load %arg2[%c0, %c0_0] : memref<8x128xf32, #tpu.memory_space<vmem>>, vector<8x128xf32>
    %c0_1 = arith.constant 0 : index
    %c0_2 = arith.constant 0 : index
    %1 = vector.load %arg4[%c0_1, %c0_2] : memref<1x512xf32, #tpu.memory_space<vmem>>, vector<1x512xf32>
    %2 = arith.truncf %0 : vector<8x128xf32> to vector<8x128xbf16>
    %c0_3 = arith.constant 0 : index
    %c0_4 = arith.constant 0 : index
    %3 = vector.load %arg3[%c0_3, %c0_4] : memref<128x512xbf16, #tpu.memory_space<vmem>>, vector<128x512xbf16>
    %cst = arith.constant dense<0.000000e+00> : vector<8x512xf32>
    %4 = tpu.matmul %2, %3, %cst {dimension_numbers = #tpu.dot_dimension_numbers<[1], [0], [0], [1], [0, 0, 1, 1], [], []>} : vector<8x128xbf16>, vector<128x512xbf16>, vector<8x512xf32> -> vector<8x512xf32>
    %5 = vector.broadcast %1 : vector<1x512xf32> to vector<8x512xf32>
    %6 = arith.addf %4, %5 : vector<8x512xf32>
    %cst_5 = arith.constant 0.000000e+00 : f32
    %7 = vector.broadcast %cst_5 : f32 to vector<8x512xf32>
    %8 = arith.maximumf %6, %7 : vector<8x512xf32>
    %9 = arith.truncf %8 : vector<8x512xf32> to vector<8x512xbf16>
    %c0_6 = arith.constant 0 : index
    %c0_7 = arith.constant 0 : index
    %10 = vector.load %arg5[%c0_6, %c0_7] : memref<512x128xbf16, #tpu.memory_space<vmem>>, vector<512x128xbf16>
    %cst_8 = arith.constant dense<0.000000e+00> : vector<8x128xf32>
    %11 = tpu.matmul %9, %10, %cst_8 {dimension_numbers = #tpu.dot_dimension_numbers<[1], [0], [0], [1], [0, 0, 1, 1], [], []>} : vector<8x512xbf16>, vector<512x128xbf16>, vector<8x128xf32> -> vector<8x128xf32>
    %c0_9 = arith.constant 0 : index
    %c0_10 = arith.constant 0 : index
    %12 = vector.load %arg6[%c0_9, %c0_10] : memref<1x128xf32, #tpu.memory_space<vmem>>, vector<1x128xf32>
    %13 = vector.broadcast %12 : vector<1x128xf32> to vector<8x128xf32>
    %14 = arith.addf %11, %13 : vector<8x128xf32>
    %15 = arith.addf %14, %0 : vector<8x128xf32>
    %cst_11 = arith.constant dense<0.000000e+00> : vector<8xf32>
    %16 = vector.multi_reduction <add>, %15, %cst_11 [1] : vector<8x128xf32> to vector<8xf32>
    %17 = vector.shape_cast %16 : vector<8xf32> to vector<8x1xf32>
    %cst_12 = arith.constant 7.812500e-03 : f32
    %18 = vector.broadcast %cst_12 : f32 to vector<8x1xf32>
    %19 = arith.mulf %17, %18 : vector<8x1xf32>
    %20 = arith.mulf %15, %15 : vector<8x128xf32>
    %cst_13 = arith.constant dense<0.000000e+00> : vector<8xf32>
    %21 = vector.multi_reduction <add>, %20, %cst_13 [1] : vector<8x128xf32> to vector<8xf32>
    %22 = vector.shape_cast %21 : vector<8xf32> to vector<8x1xf32>
    %cst_14 = arith.constant 7.812500e-03 : f32
    %23 = vector.broadcast %cst_14 : f32 to vector<8x1xf32>
    %24 = arith.mulf %22, %23 : vector<8x1xf32>
    %25 = arith.mulf %19, %19 : vector<8x1xf32>
    %26 = arith.subf %24, %25 : vector<8x1xf32>
    %27 = vector.broadcast %19 : vector<8x1xf32> to vector<8x128xf32>
    %28 = arith.subf %15, %27 : vector<8x128xf32>
    %cst_15 = arith.constant 9.99999974E-6 : f32
    %29 = vector.broadcast %cst_15 : f32 to vector<8x1xf32>
    %30 = arith.addf %26, %29 : vector<8x1xf32>
    %31 = math.rsqrt %30 : vector<8x1xf32>
    %32 = vector.broadcast %31 : vector<8x1xf32> to vector<8x128xf32>
    %33 = arith.mulf %28, %32 : vector<8x128xf32>
    %c0_16 = arith.constant 0 : index
    %c0_17 = arith.constant 0 : index
    %34 = vector.load %arg7[%c0_16, %c0_17] : memref<1x128xf32, #tpu.memory_space<vmem>>, vector<1x128xf32>
    %35 = vector.broadcast %34 : vector<1x128xf32> to vector<8x128xf32>
    %36 = arith.mulf %33, %35 : vector<8x128xf32>
    %c0_18 = arith.constant 0 : index
    %c0_19 = arith.constant 0 : index
    %37 = vector.load %arg8[%c0_18, %c0_19] : memref<1x128xf32, #tpu.memory_space<vmem>>, vector<1x128xf32>
    %38 = vector.broadcast %37 : vector<1x128xf32> to vector<8x128xf32>
    %39 = arith.addf %36, %38 : vector<8x128xf32>
    %c0_20 = arith.constant 0 : index
    %c0_21 = arith.constant 0 : index
    %40 = vector.load %arg9[%c0_20, %c0_21] : memref<8x128xf32, #tpu.memory_space<vmem>>, vector<8x128xf32>
    tpu.vector_store %arg9[%c0_20, %c0_21], %39 {strides = array<i32>} : memref<8x128xf32, #tpu.memory_space<vmem>>, vector<8x128xf32>,
    return
  }
  func.func @transform_0(%arg0: i32, %arg1: i32) -> (i32, i32) {
    %c0_i32 = arith.constant 0 : i32
    %c0_i32_0 = arith.constant 0 : i32
    return %arg0, %c0_i32 : i32, i32
  }
  func.func @transform_1(%arg0: i32, %arg1: i32) -> (i32, i32) {
    %c0_i32 = arith.constant 0 : i32
    %c0_i32_0 = arith.constant 0 : i32
    return %c0_i32, %arg1 : i32, i32
  }
  func.func @transform_2(%arg0: i32, %arg1: i32) -> (i32, i32) {
    %c0_i32 = arith.constant 0 : i32
    %c0_i32_0 = arith.constant 0 : i32
    %c0_i32_1 = arith.constant 0 : i32
    return %c0_i32, %c0_i32_0 : i32, i32
  }
  func.func @transform_3(%arg0: i32, %arg1: i32) -> (i32, i32) {
    %c0_i32 = arith.constant 0 : i32
    %c0_i32_0 = arith.constant 0 : i32
    return %arg1, %c0_i32 : i32, i32
  }
  func.func @transform_4(%arg0: i32, %arg1: i32) -> (i32, i32) {
    %c0_i32 = arith.constant 0 : i32
    %c0_i32_0 = arith.constant 0 : i32
    %c0_i32_1 = arith.constant 0 : i32
    return %c0_i32, %c0_i32_0 : i32, i32
  }
  func.func @transform_5(%arg0: i32, %arg1: i32) -> (i32, i32) {
    %c0_i32 = arith.constant 0 : i32
    %c0_i32_0 = arith.constant 0 : i32
    %c0_i32_1 = arith.constant 0 : i32
    return %c0_i32, %c0_i32_0 : i32, i32
  }
  func.func @transform_6(%arg0: i32, %arg1: i32) -> (i32, i32) {
    %c0_i32 = arith.constant 0 : i32
    %c0_i32_0 = arith.constant 0 : i32
    %c0_i32_1 = arith.constant 0 : i32
    return %c0_i32, %c0_i32_0 : i32, i32
  }
  func.func @transform_7(%arg0: i32, %arg1: i32) -> (i32, i32) {
    %c0_i32 = arith.constant 0 : i32
    %c0_i32_0 = arith.constant 0 : i32
    return %arg0, %c0_i32 : i32, i32
  }
}

</mosaic_0001>

<llo_original>
// kernel: tpu_custom_call.1
$region0: #{tpu_custom_call.1}
  #allocation0 [shape = 'u32[]', space=smem, size = 0x4, offset = 0x4, fixed_abs, tag = 'smem constant byte address 0x4 - core index']
  #allocation1 [shape = 'u32[144,128]{1,0:T(1,128)}', space=vmem, size = 0x12000, scoped, tag = 'internal scratch']
  #allocation2 [shape = 'f32[8,128]{1,0:T(8,128)}', space=vmem, size = 0x1000, scoped, tag = 'scratch operand']
  %s0 = inlined_call_operand.hbm [shape: f32[16,128], index: 0, kind: input, shape index: {}]
  %s1 = inlined_call_operand.hbm [shape: bf16[128,512], index: 1, kind: input, shape index: {}]
  %s2 = inlined_call_operand.vmem [shape: f32[1,512], index: 2, kind: input, shape index: {}]
  %s3 = inlined_call_operand.hbm [shape: bf16[512,128], index: 3, kind: input, shape index: {}]
  %s4 = inlined_call_operand.vmem [shape: f32[1,128], index: 4, kind: input, shape index: {}]
  %s5 = inlined_call_operand.vmem [shape: f32[1,128], index: 5, kind: input, shape index: {}]
  %s6 = inlined_call_operand.vmem [shape: f32[1,128], index: 6, kind: input, shape index: {}]
  %s7 = inlined_call_operand.hbm [shape: f32[16,128], index: 7, kind: output, shape index: {}]
  %s8 = sld [smem:[#allocation0]]
  $region73: #{tpu_custom_call.1} parent=0
    _
  %s10 = ssub.s32 1, %s8
  %s11 = scalar_select 0, %s10, %s8
  $region1: #{tpu_custom_call.1} parent=0
    #allocation3 [shape = 'u8[8192]{0}', space=vmem, size = 0x2000, scoped, tag = 'input window, operand 0']
    #allocation4 [shape = 's32[2]{0}', space=sflag, size = 0x8, scoped, tag = 'scoped memory for tpu_custom_call.1']
    #allocation5 [shape = 's32[2]{0}', space=sflag, size = 0x8, scoped, tag = 'scoped memory for tpu_custom_call.1']
    #allocation6 [shape = 'u8[131072]{0}', space=vmem, size = 0x20000, scoped, tag = 'input window, operand 1, single buffered']
    #allocation7 [shape = 's32[1]{0}', space=sflag, size = 0x4, scoped, tag = 'scoped memory for tpu_custom_call.1']
    #allocation8 [shape = 'u8[131072]{0}', space=vmem, size = 0x20000, scoped, tag = 'input window, operand 3, single buffered']
    #allocation9 [shape = 'u8[8192]{0}', space=vmem, size = 0x2000, scoped, tag = 'output window, operand 0']
    %12 = vsyncpa [#allocation4], 0
    %s13 = scalar_lea.sflag [#allocation4], 1
    %14 = vsyncpa %s13, 0
    %15 = vsyncpa [#allocation7], 0
    %16 = vsyncpa [#allocation5], 0
    %s17 = scalar_lea.sflag [#allocation5], 1
    %18 = vsyncpa %s17, 0
    loop: start=0, step=1, limit=4
    $region2: #{tpu_custom_call.1} parent=1 // loop_pre_header
      _
    $region3: #{tpu_custom_call.1} parent=1 // loop_header
      %s20 = sphi 0, %s24
      %p21 = scmp.ge.s32.totalorder %s20, 4
      %s27 = sphi 0, %s39
      %s28 = sphi 0, %s35
      %s29 = sphi 0, %s27
      %s30 = sphi 0, %s28
      %s31 = sphi 0, %s29
      %s32 = sphi 0, %s30
      %s42 = sphi 0, %s44
      %s45 = sphi 0, %s42
      %s46 = sphi 0, %s45
      %s62 = sphi 0, %s46
      %s68 = sphi 0, %s70
      %s71 = sphi 0, %s68
      %s72 = sphi 0, %s71
      %s88 = sphi 0, %s72
      %s92 = sphi 0, %s92
      %s94 = sphi 0, %s92
      %s95 = sphi 0, %s94
      %s109 = sphi 0, %s95
      %s115 = sphi 0, %s117
      %s118 = sphi 0, %s115
      %s119 = sphi 0, %s118
      %s135 = sphi 0, %s119
      %s139 = sphi 0, %s139
      %s141 = sphi 0, %s139
      %s142 = sphi 0, %s141
      %s156 = sphi 0, %s142
      %s160 = sphi 0, %s160
      %s162 = sphi 0, %s160
      %s163 = sphi 0, %s162
      %s177 = sphi 0, %s163
      %s181 = sphi 0, %s181
      %s183 = sphi 0, %s181
      %s184 = sphi 0, %s183
      %s198 = sphi 0, %s184
      %s204 = sphi 0, %s206
      %s207 = sphi 0, %s204
      %s208 = sphi 0, %s207
      %s224 = sphi 0, %s208
    $region4: #{tpu_custom_call.1} parent=1 // loop_header_branch
      %23 = sbr.rel (%p21) target = $region8
    $region5: #{tpu_custom_call.1} parent=1 // loop_body
      %s25 = ssub.s32 %s20, 1
      %s26 = ssub.s32 %s20, 2
      %s33 = sadd.s32 1, %s28
      %p34 = scmp.ge.s32.totalorder %s33, 1
      %s35 = scalar_select %p34, 0, %s33
      %s36 = sadd.s32 1, %s27
      %s37 = scalar_select %p34, %s36, %s27
      %p38 = scmp.ge.s32.totalorder %s37, 2
      %s39 = scalar_select %p38, 0, %s37
      %s40 = ssub.s32 %s27, %s39
      %p41 = scmp.eq.s32.totalorder %s40, 0
      %s43 = sadd.s32 %s42, 1
      %s44 = scalar_select %p41, %s42, %s43
      %p47 = pneg %p41
      %p48 = scmp.eq.s32.totalorder %s20, 1
      %p49 = por %p47, %p48
      %p50 = scmp.ne.s32.totalorder %s42, %s45
      %p51 = scmp.eq.s32.totalorder %s20, 0
      %p52 = por %p50, %p51
      %p53 = scmp.ne.s32.totalorder %s42, %s45
      %p54 = scmp.eq.s32.totalorder %s25, 1
      %p55 = por %p53, %p54
      %p56 = scmp.ne.s32.totalorder %s45, %s46
      %p57 = scmp.eq.s32.totalorder %s25, 0
      %p58 = por %p56, %p57
      %p59 = scmp.ne.s32.totalorder %s45, %s46
      %p60 = scmp.eq.s32.totalorder %s26, 1
      %p61 = por %p59, %p60
      %p63 = scmp.ne.s32.totalorder %s46, %s62
      %p64 = scmp.eq.s32.totalorder %s26, 0
      %p65 = por %p63, %p64
      %s66 = ssub.s32 %s28, %s35
      %p67 = scmp.eq.s32.totalorder %s66, 0
      %s69 = sadd.s32 %s68, 1
      %s70 = scalar_select %p67, %s68, %s69
      %p73 = pneg %p67
      %p74 = scmp.eq.s32.totalorder %s20, 1
      %p75 = por %p73, %p74
      %p76 = scmp.ne.s32.totalorder %s68, %s71
      %p77 = scmp.eq.s32.totalorder %s20, 0
      %p78 = por %p76, %p77
      %p79 = scmp.ne.s32.totalorder %s68, %s71
      %p80 = scmp.eq.s32.totalorder %s25, 1
      %p81 = por %p79, %p80
      %p82 = scmp.ne.s32.totalorder %s71, %s72
      %p83 = scmp.eq.s32.totalorder %s25, 0
      %p84 = por %p82, %p83
      %p85 = scmp.ne.s32.totalorder %s71, %s72
      %p86 = scmp.eq.s32.totalorder %s26, 1
      %p87 = por %p85, %p86
      %p89 = scmp.ne.s32.totalorder %s72, %s88
      %p90 = scmp.eq.s32.totalorder %s26, 0
      %p91 = por %p89, %p90
      %s93 = sadd.s32 %s92, 1
      %p96 = scmp.eq.s32.totalorder %s20, 1
      %p97 = scmp.ne.s32.totalorder %s92, %s94
      %p98 = scmp.eq.s32.totalorder %s20, 0
      %p99 = por %p97, %p98
      %p100 = scmp.ne.s32.totalorder %s92, %s94
      %p101 = scmp.eq.s32.totalorder %s25, 1
      %p102 = por %p100, %p101
      %p103 = scmp.ne.s32.totalorder %s94, %s95
      %p104 = scmp.eq.s32.totalorder %s25, 0
      %p105 = por %p103, %p104
      %p106 = scmp.ne.s32.totalorder %s94, %s95
      %p107 = scmp.eq.s32.totalorder %s26, 1
      %p108 = por %p106, %p107
      %p110 = scmp.ne.s32.totalorder %s95, %s109
      %p111 = scmp.eq.s32.totalorder %s26, 0
      %p112 = por %p110, %p111
      %s113 = ssub.s32 %s28, %s35
      %p114 = scmp.eq.s32.totalorder %s113, 0
      %s116 = sadd.s32 %s115, 1
      %s117 = scalar_select %p114, %s115, %s116
      %p120 = pneg %p114
      %p121 = scmp.eq.s32.totalorder %s20, 1
      %p122 = por %p120, %p121
      %p123 = scmp.ne.s32.totalorder %s115, %s118
      %p124 = scmp.eq.s32.totalorder %s20, 0
      %p125 = por %p123, %p124
      %p126 = scmp.ne.s32.totalorder %s115, %s118
      %p127 = scmp.eq.s32.totalorder %s25, 1
      %p128 = por %p126, %p127
      %p129 = scmp.ne.s32.totalorder %s118, %s119
      %p130 = scmp.eq.s32.totalorder %s25, 0
      %p131 = por %p129, %p130
      %p132 = scmp.ne.s32.totalorder %s118, %s119
      %p133 = scmp.eq.s32.totalorder %s26, 1
      %p134 = por %p132, %p133
      %p136 = scmp.ne.s32.totalorder %s119, %s135
      %p137 = scmp.eq.s32.totalorder %s26, 0
      %p138 = por %p136, %p137
      %s140 = sadd.s32 %s139, 1
      %p143 = scmp.eq.s32.totalorder %s20, 1
      %p144 = scmp.ne.s32.totalorder %s139, %s141
      %p145 = scmp.eq.s32.totalorder %s20, 0
      %p146 = por %p144, %p145
      %p147 = scmp.ne.s32.totalorder %s139, %s141
      %p148 = scmp.eq.s32.totalorder %s25, 1
      %p149 = por %p147, %p148
      %p150 = scmp.ne.s32.totalorder %s141, %s142
      %p151 = scmp.eq.s32.totalorder %s25, 0
      %p152 = por %p150, %p151
      %p153 = scmp.ne.s32.totalorder %s141, %s142
      %p154 = scmp.eq.s32.totalorder %s26, 1
      %p155 = por %p153, %p154
      %p157 = scmp.ne.s32.totalorder %s142, %s156
      %p158 = scmp.eq.s32.totalorder %s26, 0
      %p159 = por %p157, %p158
      %s161 = sadd.s32 %s160, 1
      %p164 = scmp.eq.s32.totalorder %s20, 1
      %p165 = scmp.ne.s32.totalorder %s160, %s162
      %p166 = scmp.eq.s32.totalorder %s20, 0
      %p167 = por %p165, %p166
      %p168 = scmp.ne.s32.totalorder %s160, %s162
      %p169 = scmp.eq.s32.totalorder %s25, 1
      %p170 = por %p168, %p169
      %p171 = scmp.ne.s32.totalorder %s162, %s163
      %p172 = scmp.eq.s32.totalorder %s25, 0
      %p173 = por %p171, %p172
      %p174 = scmp.ne.s32.totalorder %s162, %s163
      %p175 = scmp.eq.s32.totalorder %s26, 1
      %p176 = por %p174, %p175
      %p178 = scmp.ne.s32.totalorder %s163, %s177
      %p179 = scmp.eq.s32.totalorder %s26, 0
      %p180 = por %p178, %p179
      %s182 = sadd.s32 %s181, 1
      %p185 = scmp.eq.s32.totalorder %s20, 1
      %p186 = scmp.ne.s32.totalorder %s181, %s183
      %p187 = scmp.eq.s32.totalorder %s20, 0
      %p188 = por %p186, %p187
      %p189 = scmp.ne.s32.totalorder %s181, %s183
      %p190 = scmp.eq.s32.totalorder %s25, 1
      %p191 = por %p189, %p190
      %p192 = scmp.ne.s32.totalorder %s183, %s184
      %p193 = scmp.eq.s32.totalorder %s25, 0
      %p194 = por %p192, %p193
      %p195 = scmp.ne.s32.totalorder %s183, %s184
      %p196 = scmp.eq.s32.totalorder %s26, 1
      %p197 = por %p195, %p196
      %p199 = scmp.ne.s32.totalorder %s184, %s198
      %p200 = scmp.eq.s32.totalorder %s26, 0
      %p201 = por %p199, %p200
      %s202 = ssub.s32 %s27, %s39
      %p203 = scmp.eq.s32.totalorder %s202, 0
      %s205 = sadd.s32 %s204, 1
      %s206 = scalar_select %p203, %s204, %s205
      %p209 = pneg %p203
      %p210 = scmp.eq.s32.totalorder %s20, 1
      %p211 = por %p209, %p210
      %p212 = scmp.ne.s32.totalorder %s204, %s207
      %p213 = scmp.eq.s32.totalorder %s20, 0
      %p214 = por %p212, %p213
      %p215 = scmp.ne.s32.totalorder %s204, %s207
      %p216 = scmp.eq.s32.totalorder %s25, 1
      %p217 = por %p215, %p216
      %p218 = scmp.ne.s32.totalorder %s207, %s208
      %p219 = scmp.eq.s32.totalorder %s25, 0
      %p220 = por %p218, %p219
      %p221 = scmp.ne.s32.totalorder %s207, %s208
      %p222 = scmp.eq.s32.totalorder %s26, 1
      %p223 = por %p221, %p222
      %p225 = scmp.ne.s32.totalorder %s208, %s224
      %p226 = scmp.eq.s32.totalorder %s26, 0
      %p227 = por %p225, %p226
      %p228 = scmp.le.s32.totalorder 1, %s20
      %p229 = scmp.lt.s32.totalorder %s20, 3
      %p230 = pnand %p228, %p229
      %p231 = pneg %p230
      // Predicated region
      $region9: #{tpu_custom_call.1} parent=5 // pred_check
        _
      $region10: #{tpu_custom_call.1} parent=5 // pred_check_branch
        %233 = sbr.rel (%p230) target = $region12
      $region11: #{tpu_custom_call.1} parent=5 // pred_region
        %s234 = ssub.s32 %s20, 1
        // Predicated region
        $region13: #{tpu_custom_call.1} parent=11 // pred_check
          %p235 = pneg %p84
        $region14: #{tpu_custom_call.1} parent=11 // pred_check_branch
          %237 = sbr.rel (%p235) target = $region16
        $region15: #{tpu_custom_call.1} parent=11 // pred_region
          %s238 = smul.u32 4, %s30
          %s240 = ssub.s32 4096, 4096
          %241 = vsyncadd [#allocation7], %s240
          %s242 = smul.addr %s238, 64
          %s243 = scalar_lea.hbm %s1, %s242
          %s244 = sshll.u32 [#allocation6], 4
          %s245 = int_to_ptr.vmem [resolvable:$true] %s244
          %250 = dma.hbm_to_vmem [thread:$0]  %s243, 4096, %s245, [#allocation7], 256, 256, 16
        $region16: #{tpu_custom_call.1} parent=11 // pred_fallthru
          _
        // Predicated region
        $region17: #{tpu_custom_call.1} parent=11 // pred_check
          %p251 = pneg %p105
        $region18: #{tpu_custom_call.1} parent=11 // pred_check_branch
          %253 = sbr.rel (%p251) target = $region20
        $region19: #{tpu_custom_call.1} parent=11 // pred_region
          _
        $region20: #{tpu_custom_call.1} parent=11 // pred_fallthru
          _
        // Predicated region
        $region21: #{tpu_custom_call.1} parent=11 // pred_check
          %p254 = pneg %p131
        $region22: #{tpu_custom_call.1} parent=11 // pred_check_branch
          %256 = sbr.rel (%p254) target = $region24
        $region23: #{tpu_custom_call.1} parent=11 // pred_region
          %s257 = smul.u32 64, %s30
          %s259 = ssub.s32 4096, 4096
          %260 = vsyncadd [#allocation7], %s259
          %s261 = smul.addr %s257, 64
          %s262 = scalar_lea.hbm %s3, %s261
          %s263 = sshll.u32 [#allocation8], 4
          %s264 = int_to_ptr.vmem [resolvable:$true] %s263
          %269 = dma.hbm_to_vmem [thread:$0]  %s262, 4096, %s264, [#allocation7], 64, 64, 4
        $region24: #{tpu_custom_call.1} parent=11 // pred_fallthru
          _
        // Predicated region
        $region25: #{tpu_custom_call.1} parent=11 // pred_check
          %p270 = pneg %p152
        $region26: #{tpu_custom_call.1} parent=11 // pred_check_branch
          %272 = sbr.rel (%p270) target = $region28
        $region27: #{tpu_custom_call.1} parent=11 // pred_region
          _
        $region28: #{tpu_custom_call.1} parent=11 // pred_fallthru
          _
        // Predicated region
        $region29: #{tpu_custom_call.1} parent=11 // pred_check
          %p273 = pneg %p173
        $region30: #{tpu_custom_call.1} parent=11 // pred_check_branch
          %275 = sbr.rel (%p273) target = $region32
        $region31: #{tpu_custom_call.1} parent=11 // pred_region
          _
        $region32: #{tpu_custom_call.1} parent=11 // pred_fallthru
          _
        // Predicated region
        $region33: #{tpu_custom_call.1} parent=11 // pred_check
          %p276 = pneg %p194
        $region34: #{tpu_custom_call.1} parent=11 // pred_check_branch
          %278 = sbr.rel (%p276) target = $region36
        $region35: #{tpu_custom_call.1} parent=11 // pred_region
          _
        $region36: #{tpu_custom_call.1} parent=11 // pred_fallthru
          _
      $region12: #{tpu_custom_call.1} parent=5 // pred_fallthru
        _
      %p279 = scmp.lt.s32.totalorder %s20, 2
      // Predicated region
      $region37: #{tpu_custom_call.1} parent=5 // pred_check
        %p280 = pneg %p279
      $region38: #{tpu_custom_call.1} parent=5 // pred_check_branch
        %282 = sbr.rel (%p280) target = $region40
      $region39: #{tpu_custom_call.1} parent=5 // pred_region
        // Predicated region
        $region41: #{tpu_custom_call.1} parent=39 // pred_check
          %p283 = pneg %p52
        $region42: #{tpu_custom_call.1} parent=39 // pred_check_branch
          %285 = sbr.rel (%p283) target = $region44
        $region43: #{tpu_custom_call.1} parent=39 // pred_region
          %s286 = sand.u32 %s42, 1
          %s287 = scalar_lea.sflag [#allocation4], %s286
          %s288 = sand.u32 %s42, 1
          %s289 = smul.addr %s288, 8
          %s290 = scalar_lea.vmem [#allocation3], %s289
          %s292 = ssub.s32 128, 128
          %293 = vsyncadd %s287, %s292
          %s294 = smul.addr %s27, 128
          %s295 = scalar_lea.hbm %s0, %s294
          %s297 = sshll.u32 %s290, 4
          %s298 = int_to_ptr.vmem [resolvable:$true] %s297
          %300 = dma.hbm_to_vmem [thread:$0]  %s295, 128, %s298, %s287
        $region44: #{tpu_custom_call.1} parent=39 // pred_fallthru
          _
      $region40: #{tpu_custom_call.1} parent=5 // pred_fallthru
        _
      %p301 = scmp.le.s32.totalorder 1, %s20
      %p302 = scmp.lt.s32.totalorder %s20, 3
      %p303 = pnand %p301, %p302
      %p304 = pneg %p303
      // Predicated region
      $region45: #{tpu_custom_call.1} parent=5 // pred_check
        _
      $region46: #{tpu_custom_call.1} parent=5 // pred_check_branch
        %306 = sbr.rel (%p303) target = $region48
      $region47: #{tpu_custom_call.1} parent=5 // pred_region
        %s307 = ssub.s32 %s20, 1
        %s308 = sand.u32 %s45, 1
        %s309 = scalar_lea.sflag [#allocation4], %s308
        %s310 = sand.u32 %s45, 1
        %s311 = smul.addr %s310, 8
        %s312 = scalar_lea.vmem [#allocation3], %s311
        // Predicated region
        $region49: #{tpu_custom_call.1} parent=47 // pred_check
          %p313 = pneg %p58
        $region50: #{tpu_custom_call.1} parent=47 // pred_check_branch
          %315 = sbr.rel (%p313) target = $region52
        $region51: #{tpu_custom_call.1} parent=47 // pred_region
          %316 = dma.done %s309, 128
        $region52: #{tpu_custom_call.1} parent=47 // pred_fallthru
          _
        // Predicated region
        $region53: #{tpu_custom_call.1} parent=47 // pred_check
          %p317 = pneg %p84
        $region54: #{tpu_custom_call.1} parent=47 // pred_check_branch
          %319 = sbr.rel (%p317) target = $region56
        $region55: #{tpu_custom_call.1} parent=47 // pred_region
          %320 = dma.done [#allocation7], 4096
        $region56: #{tpu_custom_call.1} parent=47 // pred_fallthru
          _
        // Predicated region
        $region57: #{tpu_custom_call.1} parent=47 // pred_check
          %p321 = pneg %p131
        $region58: #{tpu_custom_call.1} parent=47 // pred_check_branch
          %323 = sbr.rel (%p321) target = $region60
        $region59: #{tpu_custom_call.1} parent=47 // pred_region
          %324 = dma.done [#allocation7], 4096
        $region60: #{tpu_custom_call.1} parent=47 // pred_fallthru
          _
        %s325 = sand.u32 %s45, 1
        %s326 = scalar_lea.sflag [#allocation4], %s325
        %s327 = sand.u32 %s45, 1
        %s328 = smul.addr %s327, 8
        %s329 = scalar_lea.vmem [#allocation3], %s328
        %p330 = pneg %p58
        %p331 = pneg %p55
        %p332 = pneg %p84
        %p333 = pneg %p81
        %p334 = pneg %p105
        %p335 = pneg %p102
        %p336 = pneg %p131
        %p337 = pneg %p128
        %p338 = pneg %p152
        %p339 = pneg %p149
        %p340 = pneg %p173
        %p341 = pneg %p170
        %p342 = pneg %p194
        %p343 = pneg %p191
        %p344 = pneg %p220
        %p345 = pneg %p217
        %s346 = sand.u32 %s207, 1
        %s347 = scalar_lea.sflag [#allocation5], %s346
        %s348 = sand.u32 %s207, 1
        %s349 = smul.addr %s348, 8
        %s350 = scalar_lea.vmem [#allocation9], %s349
        %s351 = smul.u32 4, %s30
        %s352 = smul.u32 64, %s30
        %v354 = vld [vmem:[%s312] sm:$0xff]
        %v355 = vld [vmem:[%s2] sm:$0xf]
        %v356 = vpack.c.bf16 %v354, %v354
        %v357 = vld [vmem:[#allocation6] sm:$0xff]
        %v358 = vld [vmem:[#allocation6 + $0x8] sm:$0xff]
        %v359 = vld [vmem:[#allocation6 + $0x10] sm:$0xff]
        %v360 = vld [vmem:[#allocation6 + $0x18] sm:$0xff]
        %v361 = vld [vmem:[#allocation6 + $0x20] sm:$0xff]
        %v362 = vld [vmem:[#allocation6 + $0x28] sm:$0xff]
        %v363 = vld [vmem:[#allocation6 + $0x30] sm:$0xff]
        %v364 = vld [vmem:[#allocation6 + $0x38] sm:$0xff]
        %v365 = vld [vmem:[#allocation6 + $0x40] sm:$0xff]
        %v366 = vld [vmem:[#allocation6 + $0x48] sm:$0xff]
        %v367 = vld [vmem:[#allocation6 + $0x50] sm:$0xff]
        %v368 = vld [vmem:[#allocation6 + $0x58] sm:$0xff]
        %v369 = vld [vmem:[#allocation6 + $0x60] sm:$0xff]
        %v370 = vld [vmem:[#allocation6 + $0x68] sm:$0xff]
        %v371 = vld [vmem:[#allocation6 + $0x70] sm:$0xff]
        %v372 = vld [vmem:[#allocation6 + $0x78] sm:$0xff]
        %v373 = vld [vmem:[#allocation6 + $0x80] sm:$0xff]
        %v374 = vld [vmem:[#allocation6 + $0x88] sm:$0xff]
        %v375 = vld [vmem:[#allocation6 + $0x90] sm:$0xff]
        %v376 = vld [vmem:[#allocation6 + $0x98] sm:$0xff]
        %v377 = vld [vmem:[#allocation6 + $0xa0] sm:$0xff]
        %v378 = vld [vmem:[#allocation6 + $0xa8] sm:$0xff]
        %v379 = vld [vmem:[#allocation6 + $0xb0] sm:$0xff]
        %v380 = vld [vmem:[#allocation6 + $0xb8] sm:$0xff]
        %v381 = vld [vmem:[#allocation6 + $0xc0] sm:$0xff]
        %v382 = vld [vmem:[#allocation6 + $0xc8] sm:$0xff]
        %v383 = vld [vmem:[#allocation6 + $0xd0] sm:$0xff]
        %v384 = vld [vmem:[#allocation6 + $0xd8] sm:$0xff]
        %v385 = vld [vmem:[#allocation6 + $0xe0] sm:$0xff]
        %v386 = vld [vmem:[#allocation6 + $0xe8] sm:$0xff]
        %v387 = vld [vmem:[#allocation6 + $0xf0] sm:$0xff]
        %v388 = vld [vmem:[#allocation6 + $0xf8] sm:$0xff]
        %v390 = vlaneseq
        %v391 = vshrl.u32 %v390, 7
        %v392 = vsub.s32 0, %v391
        %v393 = vrot.slane %v355, %v392
        %v394 = vlaneseq
        %v395 = vshrl.u32 %v394, 7
        %v396 = vsub.s32 1, %v395
        %v397 = vrot.slane %v355, %v396
        %v398 = vlaneseq
        %v399 = vshrl.u32 %v398, 7
        %v400 = vsub.s32 2, %v399
        %v401 = vrot.slane %v355, %v400
        %v402 = vlaneseq
        %v403 = vshrl.u32 %v402, 7
        %v404 = vsub.s32 3, %v403
        %v405 = vrot.slane %v355, %v404
        %v442 = vunpack.c.l.b16 %v357
        %v443 = vunpack.c.h.b16 %v357
        %v444 = vunpack.c.l.b16 %v358
        %v445 = vunpack.c.h.b16 %v358
        %v446 = vunpack.c.l.b16 %v359
        %v447 = vunpack.c.h.b16 %v359
        %v448 = vunpack.c.l.b16 %v360
        %v449 = vunpack.c.h.b16 %v360
        %v450 = vunpack.c.l.b16 %v361
        %v451 = vunpack.c.h.b16 %v361
        %v452 = vunpack.c.l.b16 %v362
        %v453 = vunpack.c.h.b16 %v362
        %v454 = vunpack.c.l.b16 %v363
        %v455 = vunpack.c.h.b16 %v363
        %v456 = vunpack.c.l.b16 %v364
        %v457 = vunpack.c.h.b16 %v364
        %v458 = vunpack.c.l.b16 %v365
        %v459 = vunpack.c.h.b16 %v365
        %v460 = vunpack.c.l.b16 %v366
        %v461 = vunpack.c.h.b16 %v366
        %v462 = vunpack.c.l.b16 %v367
        %v463 = vunpack.c.h.b16 %v367
        %v464 = vunpack.c.l.b16 %v368
        %v465 = vunpack.c.h.b16 %v368
        %v466 = vunpack.c.l.b16 %v369
        %v467 = vunpack.c.h.b16 %v369
        %v468 = vunpack.c.l.b16 %v370
        %v469 = vunpack.c.h.b16 %v370
        %v470 = vunpack.c.l.b16 %v371
        %v471 = vunpack.c.h.b16 %v371
        %v472 = vunpack.c.l.b16 %v372
        %v473 = vunpack.c.h.b16 %v372
        %v474 = vunpack.c.l.b16 %v373
        %v475 = vunpack.c.h.b16 %v373
        %v476 = vunpack.c.l.b16 %v374
        %v477 = vunpack.c.h.b16 %v374
        %v478 = vunpack.c.l.b16 %v375
        %v479 = vunpack.c.h.b16 %v375
        %v480 = vunpack.c.l.b16 %v376
        %v481 = vunpack.c.h.b16 %v376
        %v482 = vunpack.c.l.b16 %v377
        %v483 = vunpack.c.h.b16 %v377
        %v484 = vunpack.c.l.b16 %v378
        %v485 = vunpack.c.h.b16 %v378
        %v486 = vunpack.c.l.b16 %v379
        %v487 = vunpack.c.h.b16 %v379
        %v488 = vunpack.c.l.b16 %v380
        %v489 = vunpack.c.h.b16 %v380
        %v490 = vunpack.c.l.b16 %v381
        %v491 = vunpack.c.h.b16 %v381
        %v492 = vunpack.c.l.b16 %v382
        %v493 = vunpack.c.h.b16 %v382
        %v494 = vunpack.c.l.b16 %v383
        %v495 = vunpack.c.h.b16 %v383
        %v496 = vunpack.c.l.b16 %v384
        %v497 = vunpack.c.h.b16 %v384
        %v498 = vunpack.c.l.b16 %v385
        %v499 = vunpack.c.h.b16 %v385
        %v500 = vunpack.c.l.b16 %v386
        %v501 = vunpack.c.h.b16 %v386
        %v502 = vunpack.c.l.b16 %v387
        %v503 = vunpack.c.h.b16 %v387
        %v504 = vunpack.c.l.b16 %v388
        %v505 = vunpack.c.h.b16 %v388
        %v506 = vpack.c.b16 %v446, %v442
        %v507 = vpack.c.b16 %v447, %v443
        %v508 = vpack.c.b16 %v448, %v444
        %v509 = vpack.c.b16 %v449, %v445
        %v510 = vpack.c.b16 %v454, %v450
        %v511 = vpack.c.b16 %v455, %v451
        %v512 = vpack.c.b16 %v456, %v452
        %v513 = vpack.c.b16 %v457, %v453
        %v514 = vpack.c.b16 %v462, %v458
        %v515 = vpack.c.b16 %v463, %v459
        %v516 = vpack.c.b16 %v464, %v460
        %v517 = vpack.c.b16 %v465, %v461
        %v518 = vpack.c.b16 %v470, %v466
        %v519 = vpack.c.b16 %v471, %v467
        %v520 = vpack.c.b16 %v472, %v468
        %v521 = vpack.c.b16 %v473, %v469
        %v522 = vpack.c.b16 %v478, %v474
        %v523 = vpack.c.b16 %v479, %v475
        %v524 = vpack.c.b16 %v480, %v476
        %v525 = vpack.c.b16 %v481, %v477
        %v526 = vpack.c.b16 %v486, %v482
        %v527 = vpack.c.b16 %v487, %v483
        %v528 = vpack.c.b16 %v488, %v484
        %v529 = vpack.c.b16 %v489, %v485
        %v530 = vpack.c.b16 %v494, %v490
        %v531 = vpack.c.b16 %v495, %v491
        %v532 = vpack.c.b16 %v496, %v492
        %v533 = vpack.c.b16 %v497, %v493
        %v534 = vpack.c.b16 %v502, %v498
        %v535 = vpack.c.b16 %v503, %v499
        %v536 = vpack.c.b16 %v504, %v500
        %v537 = vpack.c.b16 %v505, %v501
        %570 = vmatprep.subr.bf16.mxu0 %v507
        %571 = vmatpush1.bf16.msra.mxu0 %v506
        %572 = vmatprep.subr.bf16.mxu0 %v511
        %573 = vmatpush1.bf16.msra.mxu0 %v510
        %574 = vmatprep.subr.bf16.mxu0 %v515
        %575 = vmatpush1.bf16.msra.mxu0 %v514
        %576 = vmatprep.subr.bf16.mxu0 %v519
        %577 = vmatpush1.bf16.msra.mxu0 %v518
        %578 = vmatprep.subr.bf16.mxu0 %v523
        %579 = vmatpush1.bf16.msra.mxu0 %v522
        %580 = vmatprep.subr.bf16.mxu0 %v527
        %581 = vmatpush1.bf16.msra.mxu0 %v526
        %582 = vmatprep.subr.bf16.mxu0 %v531
        %583 = vmatpush1.bf16.msra.mxu0 %v530
        %584 = vmatprep.subr.bf16.mxu0 %v535
        %585 = vmatpush1.bf16.msra.mxu0 %v534
        %586 = vmatprep.subr.bf16.mxu0 0
        %587 = vmatpush1.bf16.msra.mxu0 0
        %588 = vmatprep.subr.bf16.mxu0 0
        %589 = vmatpush1.bf16.msra.mxu0 0
        %590 = vmatprep.subr.bf16.mxu0 0
        %591 = vmatpush1.bf16.msra.mxu0 0
        %592 = vmatprep.subr.bf16.mxu0 0
        %593 = vmatpush1.bf16.msra.mxu0 0
        %594 = vmatprep.subr.bf16.mxu0 0
        %595 = vmatpush1.bf16.msra.mxu0 0
        %596 = vmatprep.subr.bf16.mxu0 0
        %597 = vmatpush1.bf16.msra.mxu0 0
        %598 = vmatprep.subr.bf16.mxu0 0
        %599 = vmatpush1.bf16.msra.mxu0 0
        %600 = vmatprep.subr.bf16.mxu0 0
        %601 = vmatpush1.bf16.msra.mxu0 0
        %602 = vmatprep.mubr.bf16.mxu0 0
        %603 = vmatmul.mubr.bf16.gmra.mrb[0].mxu0 %v356
        %v604 = vpop.f32.mrb[0].mxu0
        %v605 = vadd.f32 %v393, %v604
        %v606 = vpop.f32.mrb[0].mxu0
        %v607 = vadd.f32 %v397, %v606
        %v608 = vpop.f32.mrb[0].mxu0
        %v609 = vpop.f32.mrb[0].mxu0
        %610 = vdwg.mxu0
        %611 = vmatprep.subr.bf16.mxu0 %v509
        %612 = vmatpush1.bf16.msra.mxu0 %v508
        %613 = vmatprep.subr.bf16.mxu0 %v513
        %614 = vmatpush1.bf16.msra.mxu0 %v512
        %615 = vmatprep.subr.bf16.mxu0 %v517
        %616 = vmatpush1.bf16.msra.mxu0 %v516
        %617 = vmatprep.subr.bf16.mxu0 %v521
        %618 = vmatpush1.bf16.msra.mxu0 %v520
        %619 = vmatprep.subr.bf16.mxu0 %v525
        %620 = vmatpush1.bf16.msra.mxu0 %v524
        %621 = vmatprep.subr.bf16.mxu0 %v529
        %622 = vmatpush1.bf16.msra.mxu0 %v528
        %623 = vmatprep.subr.bf16.mxu0 %v533
        %624 = vmatpush1.bf16.msra.mxu0 %v532
        %625 = vmatprep.subr.bf16.mxu0 %v537
        %626 = vmatpush1.bf16.msra.mxu0 %v536
        %627 = vmatprep.subr.bf16.mxu0 0
        %628 = vmatpush1.bf16.msra.mxu0 0
        %629 = vmatprep.subr.bf16.mxu0 0
        %630 = vmatpush1.bf16.msra.mxu0 0
        %631 = vmatprep.subr.bf16.mxu0 0
        %632 = vmatpush1.bf16.msra.mxu0 0
        %633 = vmatprep.subr.bf16.mxu0 0
        %634 = vmatpush1.bf16.msra.mxu0 0
        %635 = vmatprep.subr.bf16.mxu0 0
        %636 = vmatpush1.bf16.msra.mxu0 0
        %637 = vmatprep.subr.bf16.mxu0 0
        %638 = vmatpush1.bf16.msra.mxu0 0
        %639 = vmatprep.subr.bf16.mxu0 0
        %640 = vmatpush1.bf16.msra.mxu0 0
        %641 = vmatprep.subr.bf16.mxu0 0
        %642 = vmatpush1.bf16.msra.mxu0 0
        %643 = vmatprep.mubr.bf16.mxu0 0
        %644 = vmatmul.mubr.bf16.gmra.mrb[0].mxu0 %v356
        %v645 = vpop.f32.mrb[0].mxu0
        %v646 = vadd.f32 %v401, %v645
        %v647 = vpop.f32.mrb[0].mxu0
        %v648 = vadd.f32 %v405, %v647
        %v649 = vpop.f32.mrb[0].mxu0
        %v650 = vpop.f32.mrb[0].mxu0
        %651 = vdwg.mxu0
        %v652 = vmax.f32 %v605, 0.0
        %v653 = vmax.f32 %v607, 0.0
        %v654 = vmax.f32 %v646, 0.0
        %v655 = vmax.f32 %v648, 0.0
        %v656 = vpack.c.bf16 %v652, %v652
        %v657 = vpack.c.bf16 %v653, %v653
        %v658 = vpack.c.bf16 %v654, %v654
        %v659 = vpack.c.bf16 %v655, %v655
        %v660 = vld [vmem:[#allocation8] sm:$0xf]
        %v661 = vld [vmem:[#allocation8 + $0x4] sm:$0xf]
        %v662 = vld [vmem:[#allocation8 + $0x8] sm:$0xf]
        %v663 = vld [vmem:[#allocation8 + $0xc] sm:$0xf]
        %v664 = vld [vmem:[#allocation8 + $0x10] sm:$0xf]
        %v665 = vld [vmem:[#allocation8 + $0x14] sm:$0xf]
        %v666 = vld [vmem:[#allocation8 + $0x18] sm:$0xf]
        %v667 = vld [vmem:[#allocation8 + $0x1c] sm:$0xf]
        %v668 = vld [vmem:[#allocation8 + $0x20] sm:$0xf]
        %v669 = vld [vmem:[#allocation8 + $0x24] sm:$0xf]
        %v670 = vld [vmem:[#allocation8 + $0x28] sm:$0xf]
        %v671 = vld [vmem:[#allocation8 + $0x2c] sm:$0xf]
        %v672 = vld [vmem:[#allocation8 + $0x30] sm:$0xf]
        %v673 = vld [vmem:[#allocation8 + $0x34] sm:$0xf]
        %v674 = vld [vmem:[#allocation8 + $0x38] sm:$0xf]
        %v675 = vld [vmem:[#allocation8 + $0x3c] sm:$0xf]
        %v676 = vld [vmem:[#allocation8 + $0x40] sm:$0xf]
        %v677 = vld [vmem:[#allocation8 + $0x44] sm:$0xf]
        %v678 = vld [vmem:[#allocation8 + $0x48] sm:$0xf]
        %v679 = vld [vmem:[#allocation8 + $0x4c] sm:$0xf]
        %v680 = vld [vmem:[#allocation8 + $0x50] sm:$0xf]
        %v681 = vld [vmem:[#allocation8 + $0x54] sm:$0xf]
        %v682 = vld [vmem:[#allocation8 + $0x58] sm:$0xf]
        %v683 = vld [vmem:[#allocation8 + $0x5c] sm:$0xf]
        %v684 = vld [vmem:[#allocation8 + $0x60] sm:$0xf]
        %v685 = vld [vmem:[#allocation8 + $0x64] sm:$0xf]
        %v686 = vld [vmem:[#allocation8 + $0x68] sm:$0xf]
        %v687 = vld [vmem:[#allocation8 + $0x6c] sm:$0xf]
        %v688 = vld [vmem:[#allocation8 + $0x70] sm:$0xf]
        %v689 = vld [vmem:[#allocation8 + $0x74] sm:$0xf]
        %v690 = vld [vmem:[#allocation8 + $0x78] sm:$0xf]
        %v691 = vld [vmem:[#allocation8 + $0x7c] sm:$0xf]
        %v692 = vld [vmem:[#allocation8 + $0x80] sm:$0xf]
        %v693 = vld [vmem:[#allocation8 + $0x84] sm:$0xf]
        %v694 = vld [vmem:[#allocation8 + $0x88] sm:$0xf]
        %v695 = vld [vmem:[#allocation8 + $0x8c] sm:$0xf]
        %v696 = vld [vmem:[#allocation8 + $0x90] sm:$0xf]
        %v697 = vld [vmem:[#allocation8 + $0x94] sm:$0xf]
        %v698 = vld [vmem:[#allocation8 + $0x98] sm:$0xf]
        %v699 = vld [vmem:[#allocation8 + $0x9c] sm:$0xf]
        %v700 = vld [vmem:[#allocation8 + $0xa0] sm:$0xf]
        %v701 = vld [vmem:[#allocation8 + $0xa4] sm:$0xf]
        %v702 = vld [vmem:[#allocation8 + $0xa8] sm:$0xf]
        %v703 = vld [vmem:[#allocation8 + $0xac] sm:$0xf]
        %v704 = vld [vmem:[#allocation8 + $0xb0] sm:$0xf]
        %v705 = vld [vmem:[#allocation8 + $0xb4] sm:$0xf]
        %v706 = vld [vmem:[#allocation8 + $0xb8] sm:$0xf]
        %v707 = vld [vmem:[#allocation8 + $0xbc] sm:$0xf]
        %v708 = vld [vmem:[#allocation8 + $0xc0] sm:$0xf]
        %v709 = vld [vmem:[#allocation8 + $0xc4] sm:$0xf]
        %v710 = vld [vmem:[#allocation8 + $0xc8] sm:$0xf]
        %v711 = vld [vmem:[#allocation8 + $0xcc] sm:$0xf]
        %v712 = vld [vmem:[#allocation8 + $0xd0] sm:$0xf]
        %v713 = vld [vmem:[#allocation8 + $0xd4] sm:$0xf]
        %v714 = vld [vmem:[#allocation8 + $0xd8] sm:$0xf]
        %v715 = vld [vmem:[#allocation8 + $0xdc] sm:$0xf]
        %v716 = vld [vmem:[#allocation8 + $0xe0] sm:$0xf]
        %v717 = vld [vmem:[#allocation8 + $0xe4] sm:$0xf]
        %v718 = vld [vmem:[#allocation8 + $0xe8] sm:$0xf]
        %v719 = vld [vmem:[#allocation8 + $0xec] sm:$0xf]
        %v720 = vld [vmem:[#allocation8 + $0xf0] sm:$0xf]
        %v721 = vld [vmem:[#allocation8 + $0xf4] sm:$0xf]
        %v722 = vld [vmem:[#allocation8 + $0xf8] sm:$0xf]
        %v723 = vld [vmem:[#allocation8 + $0xfc] sm:$0xf]
        %v724 = vld [vmem:[%s4] sm:$0x1]
        %v726 = vlaneseq
        %v727 = vshrl.u32 %v726, 7
        %v728 = vsub.s32 0, %v727
        %v729 = vrot.slane %v724, %v728
        %v795 = vunpack.c.l.b16 %v660
        %v796 = vunpack.c.l.b16 %v661
        %v797 = vunpack.c.l.b16 %v662
        %v798 = vunpack.c.l.b16 %v663
        %v799 = vunpack.c.l.b16 %v664
        %v800 = vunpack.c.l.b16 %v665
        %v801 = vunpack.c.l.b16 %v666
        %v802 = vunpack.c.l.b16 %v667
        %v803 = vunpack.c.l.b16 %v668
        %v804 = vunpack.c.l.b16 %v669
        %v805 = vunpack.c.l.b16 %v670
        %v806 = vunpack.c.l.b16 %v671
        %v807 = vunpack.c.l.b16 %v672
        %v808 = vunpack.c.l.b16 %v673
        %v809 = vunpack.c.l.b16 %v674
        %v810 = vunpack.c.l.b16 %v675
        %v811 = vunpack.c.l.b16 %v676
        %v812 = vunpack.c.l.b16 %v677
        %v813 = vunpack.c.l.b16 %v678
        %v814 = vunpack.c.l.b16 %v679
        %v815 = vunpack.c.l.b16 %v680
        %v816 = vunpack.c.l.b16 %v681
        %v817 = vunpack.c.l.b16 %v682
        %v818 = vunpack.c.l.b16 %v683
        %v819 = vunpack.c.l.b16 %v684
        %v820 = vunpack.c.l.b16 %v685
        %v821 = vunpack.c.l.b16 %v686
        %v822 = vunpack.c.l.b16 %v687
        %v823 = vunpack.c.l.b16 %v688
        %v824 = vunpack.c.l.b16 %v689
        %v825 = vunpack.c.l.b16 %v690
        %v826 = vunpack.c.l.b16 %v691
        %v827 = vunpack.c.l.b16 %v692
        %v828 = vunpack.c.l.b16 %v693
        %v829 = vunpack.c.l.b16 %v694
        %v830 = vunpack.c.l.b16 %v695
        %v831 = vunpack.c.l.b16 %v696
        %v832 = vunpack.c.l.b16 %v697
        %v833 = vunpack.c.l.b16 %v698
        %v834 = vunpack.c.l.b16 %v699
        %v835 = vunpack.c.l.b16 %v700
        %v836 = vunpack.c.l.b16 %v701
        %v837 = vunpack.c.l.b16 %v702
        %v838 = vunpack.c.l.b16 %v703
        %v839 = vunpack.c.l.b16 %v704
        %v840 = vunpack.c.l.b16 %v705
        %v841 = vunpack.c.l.b16 %v706
        %v842 = vunpack.c.l.b16 %v707
        %v843 = vunpack.c.l.b16 %v708
        %v844 = vunpack.c.l.b16 %v709
        %v845 = vunpack.c.l.b16 %v710
        %v846 = vunpack.c.l.b16 %v711
        %v847 = vunpack.c.l.b16 %v712
        %v848 = vunpack.c.l.b16 %v713
        %v849 = vunpack.c.l.b16 %v714
        %v850 = vunpack.c.l.b16 %v715
        %v851 = vunpack.c.l.b16 %v716
        %v852 = vunpack.c.l.b16 %v717
        %v853 = vunpack.c.l.b16 %v718
        %v854 = vunpack.c.l.b16 %v719
        %v855 = vunpack.c.l.b16 %v720
        %v856 = vunpack.c.l.b16 %v721
        %v857 = vunpack.c.l.b16 %v722
        %v858 = vunpack.c.l.b16 %v723
        %v859 = vpack.c.b16 %v796, %v795
        %v860 = vpack.c.b16 %v798, %v797
        %v861 = vpack.c.b16 %v800, %v799
        %v862 = vpack.c.b16 %v802, %v801
        %v863 = vpack.c.b16 %v804, %v803
        %v864 = vpack.c.b16 %v806, %v805
        %v865 = vpack.c.b16 %v808, %v807
        %v866 = vpack.c.b16 %v810, %v809
        %v867 = vpack.c.b16 %v812, %v811
        %v868 = vpack.c.b16 %v814, %v813
        %v869 = vpack.c.b16 %v816, %v815
        %v870 = vpack.c.b16 %v818, %v817
        %v871 = vpack.c.b16 %v820, %v819
        %v872 = vpack.c.b16 %v822, %v821
        %v873 = vpack.c.b16 %v824, %v823
        %v874 = vpack.c.b16 %v826, %v825
        %v875 = vpack.c.b16 %v828, %v827
        %v876 = vpack.c.b16 %v830, %v829
        %v877 = vpack.c.b16 %v832, %v831
        %v878 = vpack.c.b16 %v834, %v833
        %v879 = vpack.c.b16 %v836, %v835
        %v880 = vpack.c.b16 %v838, %v837
        %v881 = vpack.c.b16 %v840, %v839
        %v882 = vpack.c.b16 %v842, %v841
        %v883 = vpack.c.b16 %v844, %v843
        %v884 = vpack.c.b16 %v846, %v845
        %v885 = vpack.c.b16 %v848, %v847
        %v886 = vpack.c.b16 %v850, %v849
        %v887 = vpack.c.b16 %v852, %v851
        %v888 = vpack.c.b16 %v854, %v853
        %v889 = vpack.c.b16 %v856, %v855
        %v890 = vpack.c.b16 %v858, %v857
        %923 = vmatprep.subr.bf16.mxu0 0
        %924 = vmatpush1.bf16.msra.mxu0 %v859
        %925 = vmatprep.subr.bf16.mxu0 0
        %926 = vmatpush1.bf16.msra.mxu0 %v860
        %927 = vmatprep.subr.bf16.mxu0 0
        %928 = vmatpush1.bf16.msra.mxu0 %v861
        %929 = vmatprep.subr.bf16.mxu0 0
        %930 = vmatpush1.bf16.msra.mxu0 %v862
        %931 = vmatprep.subr.bf16.mxu0 0
        %932 = vmatpush1.bf16.msra.mxu0 %v863
        %933 = vmatprep.subr.bf16.mxu0 0
        %934 = vmatpush1.bf16.msra.mxu0 %v864
        %935 = vmatprep.subr.bf16.mxu0 0
        %936 = vmatpush1.bf16.msra.mxu0 %v865
        %937 = vmatprep.subr.bf16.mxu0 0
        %938 = vmatpush1.bf16.msra.mxu0 %v866
        %939 = vmatprep.subr.bf16.mxu0 0
        %940 = vmatpush1.bf16.msra.mxu0 %v867
        %941 = vmatprep.subr.bf16.mxu0 0
        %942 = vmatpush1.bf16.msra.mxu0 %v868
        %943 = vmatprep.subr.bf16.mxu0 0
        %944 = vmatpush1.bf16.msra.mxu0 %v869
        %945 = vmatprep.subr.bf16.mxu0 0
        %946 = vmatpush1.bf16.msra.mxu0 %v870
        %947 = vmatprep.subr.bf16.mxu0 0
        %948 = vmatpush1.bf16.msra.mxu0 %v871
        %949 = vmatprep.subr.bf16.mxu0 0
        %950 = vmatpush1.bf16.msra.mxu0 %v872
        %951 = vmatprep.subr.bf16.mxu0 0
        %952 = vmatpush1.bf16.msra.mxu0 %v873
        %953 = vmatprep.subr.bf16.mxu0 0
        %954 = vmatpush1.bf16.msra.mxu0 %v874
        %955 = vmatprep.mubr.bf16.mxu0 %v657
        %956 = vmatmul.mubr.bf16.gmra.mrb[0].mxu0 %v656
        %v957 = vpop.f32.mrb[0].mxu0
        %v958 = vadd.f32 %v729, %v957
        %v959 = vpop.f32.mrb[0].mxu0
        %v960 = vpop.f32.mrb[0].mxu0
        %v961 = vpop.f32.mrb[0].mxu0
        %962 = vdwg.mxu0
        %963 = vmatprep.subr.bf16.mxu0 0
        %964 = vmatpush1.bf16.msra.mxu0 %v875
        %965 = vmatprep.subr.bf16.mxu0 0
        %966 = vmatpush1.bf16.msra.mxu0 %v876
        %967 = vmatprep.subr.bf16.mxu0 0
        %968 = vmatpush1.bf16.msra.mxu0 %v877
        %969 = vmatprep.subr.bf16.mxu0 0
        %970 = vmatpush1.bf16.msra.mxu0 %v878
        %971 = vmatprep.subr.bf16.mxu0 0
        %972 = vmatpush1.bf16.msra.mxu0 %v879
        %973 = vmatprep.subr.bf16.mxu0 0
        %974 = vmatpush1.bf16.msra.mxu0 %v880
        %975 = vmatprep.subr.bf16.mxu0 0
        %976 = vmatpush1.bf16.msra.mxu0 %v881
        %977 = vmatprep.subr.bf16.mxu0 0
        %978 = vmatpush1.bf16.msra.mxu0 %v882
        %979 = vmatprep.subr.bf16.mxu0 0
        %980 = vmatpush1.bf16.msra.mxu0 %v883
        %981 = vmatprep.subr.bf16.mxu0 0
        %982 = vmatpush1.bf16.msra.mxu0 %v884
        %983 = vmatprep.subr.bf16.mxu0 0
        %984 = vmatpush1.bf16.msra.mxu0 %v885
        %985 = vmatprep.subr.bf16.mxu0 0
        %986 = vmatpush1.bf16.msra.mxu0 %v886
        %987 = vmatprep.subr.bf16.mxu0 0
        %988 = vmatpush1.bf16.msra.mxu0 %v887
        %989 = vmatprep.subr.bf16.mxu0 0
        %990 = vmatpush1.bf16.msra.mxu0 %v888
        %991 = vmatprep.subr.bf16.mxu0 0
        %992 = vmatpush1.bf16.msra.mxu0 %v889
        %993 = vmatprep.subr.bf16.mxu0 0
        %994 = vmatpush1.bf16.msra.mxu0 %v890
        %995 = vmatprep.mubr.bf16.mxu0 %v659
        %996 = vmatmul.mubr.bf16.gmra.mrb[0].mxu0 %v658
        %v997 = vpop.f32.mrb[0].mxu0
        %v998 = vadd.f32 %v958, %v997
        %v999 = vpop.f32.mrb[0].mxu0
        %v1000 = vpop.f32.mrb[0].mxu0
        %v1001 = vpop.f32.mrb[0].mxu0
        %1002 = vdwg.mxu0
        %v1003 = vadd.f32 %v998, %v354
        %1004 = vadd.xlane.f32.xlu0 %v1003
        %v1005 = vpop.xlane.xlu0 %1004
        %v1006 = vmul.f32 %v1005, 0.0078125
        %v1007 = vmul.f32 %v1003, %v1003
        %1008 = vadd.xlane.f32.xlu0 %v1007
        %v1009 = vpop.xlane.xlu0 %1008
        %v1010 = vmul.f32 %v1009, 0.0078125
        %v1011 = vmul.f32 %v1006, %v1006
        %v1012 = vsub.f32 %v1010, %v1011
        %v1013 = vsub.f32 %v1003, %v1006
        %v1014 = vadd.f32 %v1012, 1e-05
        %v1015 = vrsqrt.pop %v1014
        %v1016 = vmul.f32 %v1013, %v1015
        %v1017 = vld [vmem:[%s5] sm:$0x1]
        %v1019 = vlaneseq
        %v1020 = vshrl.u32 %v1019, 7
        %v1021 = vsub.s32 0, %v1020
        %v1022 = vrot.slane %v1017, %v1021
        %v1024 = vmul.f32 %v1016, %v1022
        %v1025 = vld [vmem:[%s6] sm:$0x1]
        %v1027 = vlaneseq
        %v1028 = vshrl.u32 %v1027, 7
        %v1029 = vsub.s32 0, %v1028
        %v1030 = vrot.slane %v1025, %v1029
        %v1032 = vadd.f32 %v1024, %v1030
        %1033 = vst [vmem:[%s350] sm:$0xff] %v1032
        %s1034 = sand.u32 %s207, 1
        %s1035 = scalar_lea.sflag [#allocation5], %s1034
        %s1036 = sand.u32 %s207, 1
        %s1037 = smul.addr %s1036, 8
        %s1038 = scalar_lea.vmem [#allocation9], %s1037
        // Predicated region
        $region61: #{tpu_custom_call.1} parent=47 // pred_check
          %p1039 = pneg %p217
        $region62: #{tpu_custom_call.1} parent=47 // pred_check_branch
          %1041 = sbr.rel (%p1039) target = $region64
        $region63: #{tpu_custom_call.1} parent=47 // pred_region
          %s1043 = ssub.s32 128, 128
          %1044 = vsyncadd %s1035, %s1043
          %s1045 = smul.addr %s29, 128
          %s1046 = scalar_lea.hbm %s7, %s1045
          %s1048 = sshll.u32 %s1038, 4
          %s1049 = int_to_ptr.vmem [resolvable:$true] %s1048
          %1051 = dma.vmem_to_hbm [thread:$0]  %s1049, 128, %s1046, %s1035
        $region64: #{tpu_custom_call.1} parent=47 // pred_fallthru
          _
      $region48: #{tpu_custom_call.1} parent=5 // pred_fallthru
        _
      %p1052 = scmp.le.s32.totalorder 2, %s20
      // Predicated region
      $region65: #{tpu_custom_call.1} parent=5 // pred_check
        %p1053 = pneg %p1052
      $region66: #{tpu_custom_call.1} parent=5 // pred_check_branch
        %1055 = sbr.rel (%p1053) target = $region68
      $region67: #{tpu_custom_call.1} parent=5 // pred_region
        %s1056 = ssub.s32 %s20, 2
        // Predicated region
        $region69: #{tpu_custom_call.1} parent=67 // pred_check
          %p1057 = pneg %p223
        $region70: #{tpu_custom_call.1} parent=67 // pred_check_branch
          %1059 = sbr.rel (%p1057) target = $region72
        $region71: #{tpu_custom_call.1} parent=67 // pred_region
          %s1060 = sand.u32 %s208, 1
          %s1061 = scalar_lea.sflag [#allocation5], %s1060
          %s1062 = sand.u32 %s208, 1
          %s1063 = smul.addr %s1062, 8
          %s1064 = scalar_lea.vmem [#allocation9], %s1063
          %1065 = dma.done %s1061, 128
        $region72: #{tpu_custom_call.1} parent=67 // pred_fallthru
          _
      $region68: #{tpu_custom_call.1} parent=5 // pred_fallthru
        _
    $region6: #{tpu_custom_call.1} parent=1 // loop_footer
      %s24 = sadd.s32 1, %s20
    $region7: #{tpu_custom_call.1} parent=1 // loop_footer_branch
      %19 = sbr.rel target = $region3
    $region8: #{tpu_custom_call.1} parent=1 // loop_exit
      _
    %1066 = vsyncpa [#allocation4], 1
    %s1067 = scalar_lea.sflag [#allocation4], 1
    %1068 = vsyncpa %s1067, 1
    %1069 = vsyncpa [#allocation7], 1
    %1070 = vsyncpa [#allocation5], 1
    %s1071 = scalar_lea.sflag [#allocation5], 1
    %1072 = vsyncpa %s1071, 1

</llo_original>
